<compile_context>
chip_gen: v5e
topology: v5e:2x2
jax: 0.10.0
libtpu: 0.0.40
codegen_flags: <defaults>
</compile_context>

<pallas_src>
import jax
import jax.numpy as jnp
import numpy as np
from jax.experimental import pallas as pl
from jax.experimental.pallas import tpu as pltpu


def _round_up(x, m):
    return ((x + m - 1) // m) * m


# ---------------------------------------------------------------------------
# Kernel: entire ConvNetwork forward for one tile of batch rows.
# ---------------------------------------------------------------------------
def _convnet_kernel(x_ref, v1_ref, b1_ref, v2_ref, b2_ref, w3_ref, b3_ref, o_ref):
    n1 = v1_ref.shape[1]          # 16*Cout1 = (4 corners) x (4 pooled positions) x Cout1
    q1 = n1 // 4                  # one corner group = (pooled position, channel) = 128
    n2 = v2_ref.shape[1]          # 4 corners x 128 (padded channel group)
    q2 = n2 // 4                  # padded corner group width = 128 (vreg-aligned)

    # ---- layer 1: conv(3x3, pad 1) + bias + ReLU + 2x2 max-pool ----
    x = x_ref[...].astype(jnp.bfloat16)                                   # (TB, 16*Cin)
    z1 = jnp.dot(x, v1_ref[...], preferred_element_type=jnp.float32)      # (TB, 16*Cout1)
    z1 = jnp.maximum(z1 + b1_ref[...], 0.0)
    # ReLU is monotone, so relu-then-max == torch's ReLU -> MaxPool2d order.
    # Each q1=128-wide corner group is vreg-aligned; columns are (pooled pos, channel).
    h1 = jnp.maximum(jnp.maximum(z1[:, 0 * q1:1 * q1], z1[:, 1 * q1:2 * q1]),
                     jnp.maximum(z1[:, 2 * q1:3 * q1], z1[:, 3 * q1:4 * q1]))  # (TB, 128)

    # ---- layer 2: conv(3x3, pad 1) + bias + ReLU + 2x2 max-pool (single output) ----
    # Corner groups are zero-padded to 128 lanes (zero bias -> padded cols stay 0 after
    # ReLU and the max), so these slices are full-vreg and h2 is a 128-wide operand.
    z2 = jnp.dot(h1.astype(jnp.bfloat16), v2_ref[...],
                 preferred_element_type=jnp.float32)                      # (TB, 4*128)
    z2 = jnp.maximum(z2 + b2_ref[...], 0.0)
    h2 = jnp.maximum(jnp.maximum(z2[:, 0 * q2:1 * q2], z2[:, 1 * q2:2 * q2]),
                     jnp.maximum(z2[:, 2 * q2:3 * q2], z2[:, 3 * q2:4 * q2]))  # (TB, 128)

    # ---- layer 3: Linear + ReLU (K padded to 128, E padded to multiple of 128) ----
    z3 = jnp.dot(h2.astype(jnp.bfloat16), w3_ref[...],
                 preferred_element_type=jnp.float32)                      # (TB, E_pad)
    o_ref[...] = jnp.maximum(z3 + b3_ref[...], 0.0).astype(o_ref.dtype)   # unmasked vst


# ---------------------------------------------------------------------------
# One-time parameter preparation (outside jit): fold the fixed-spatial convs into
# dense matmul matrices, pad to lane-dense column groups, cast weights to bf16.
# ---------------------------------------------------------------------------
def prepare_params(torch_params, dtype=jnp.bfloat16):
    w1 = np.asarray(torch_params["w1"], np.float32)   # (Cout1, Cin, 3, 3)  torch Conv2d
    b1 = np.asarray(torch_params["b1"], np.float32)
    w2 = np.asarray(torch_params["w2"], np.float32)   # (Cout2, Cout1, 3, 3)
    b2 = np.asarray(torch_params["b2"], np.float32)
    w3 = np.asarray(torch_params["w3"], np.float32)   # (E, Cout2)          torch Linear
    b3 = np.asarray(torch_params["b3"], np.float32)
    Cout1, Cin = w1.shape[0], w1.shape[1]
    Cout2, Cin2 = w2.shape[0], w2.shape[1]
    E = w3.shape[0]

    # V1[cin*16 + ih*4 + iw, ((corner*4 + pooled)*Cout1 + co)] = w1[co, cin, ky, kx]
    # rows match the NCHW flatten of the 4x4 input; absent rows implement the zero pad.
    V1 = np.zeros((Cin * 16, 16 * Cout1), np.float32)
    for di in range(2):
        for dj in range(2):
            for ph in range(2):
                for pw in range(2):
                    oh, ow = 2 * ph + di, 2 * pw + dj            # conv-output position
                    col0 = ((di * 2 + dj) * 4 + (ph * 2 + pw)) * Cout1
                    for ky in range(3):
                        for kx in range(3):
                            ih, iw = oh + ky - 1, ow + kx - 1
                            if 0 <= ih < 4 and 0 <= iw < 4:
                                rows = np.arange(Cin) * 16 + ih * 4 + iw
                                V1[rows, col0:col0 + Cout1] += w1[:, :, ky, kx].T
    b1t = np.tile(b1, 16)[None, :]                               # (1, 16*Cout1)

    # Layer 2: each corner group padded to Gp=128 columns (zeros) so in-kernel slices
    # are vreg-aligned. V2[p*Cin2 + cin, q*Gp + co] = w2[co, cin, ky, kx]; p indexes the
    # 2x2 pooled layer-1 map (matching h1's column order), q the 4 conv2 pool corners.
    Gp = max(128, _round_up(Cout2, 128))
    V2 = np.zeros((4 * Cin2, 4 * Gp), np.float32)
    b2t = np.zeros((1, 4 * Gp), np.float32)
    for oh in range(2):
        for ow in range(2):
            q = oh * 2 + ow
            b2t[0, q * Gp:q * Gp + Cout2] = b2
            for ky in range(3):
                for kx in range(3):
                    ih, iw = oh + ky - 1, ow + kx - 1
                    if 0 <= ih < 2 and 0 <= iw < 2:
                        p = ih * 2 + iw
                        V2[p * Cin2:(p + 1) * Cin2,
                           q * Gp:q * Gp + Cout2] += w2[:, :, ky, kx].T

    # Layer 3: rows padded to Gp (match padded h2; extra h2 cols are exact zeros),
    # columns padded to a multiple of 128 so the output store is unmasked/lane-dense.
    E_pad = max(128, _round_up(E, 128))
    W3 = np.zeros((Gp, E_pad), np.float32)
    W3[:Cout2, :E] = w3.T
    b3p = np.zeros((1, E_pad), np.float32)
    b3p[0, :E] = b3

    return {
        "v1": jnp.asarray(V1, dtype),                   # (16*Cin, 16*Cout1)
        "b1": jnp.asarray(b1t, jnp.float32),            # (1, 16*Cout1)
        "v2": jnp.asarray(V2, dtype),                   # (4*Cout1, 4*128)
        "b2": jnp.asarray(b2t, jnp.float32),            # (1, 4*128)
        "w3": jnp.asarray(W3, dtype),                   # (128, E_pad)
        "b3": jnp.asarray(b3p, jnp.float32),            # (1, E_pad)
    }


# ---------------------------------------------------------------------------
# Forward pass wrapper (jittable with embed_dim static / closed over).
# x_nchw: (B, cell_dim, 4, 4) like the PyTorch module (any float dtype).
# ---------------------------------------------------------------------------
def conv_network_forward(kp, x_nchw, *, embed_dim, block_rows=1024,
                         min_split_rows=256, out_dtype=jnp.float32):
    B, Cin, H, W = x_nchw.shape
    if H != 4 or W != 4:
        raise ValueError("ConvNetwork's Linear(32, embed) requires 4x4 spatial input "
                         "(two 2x2 max-pools must reduce it to 1x1).")
    K1 = Cin * 16
    n1 = kp["v1"].shape[1]
    n2 = kp["v2"].shape[1]
    E_pad = kp["b3"].shape[1]

    # NCHW flatten is a no-copy reshape. Keep the caller's dtype: bf16 inputs halve the
    # input HBM stream, f32 inputs are cast to bf16 inside the kernel (no extra wrapper
    # pass, which would be a net HBM loss).
    x_flat = x_nchw.reshape(B, K1)

    # Row tiling: single block for small (deployment-shaped) batches; otherwise at most
    # `block_rows` rows per step, while guaranteeing >=2 grid steps so the "parallel"
    # axis can span both TensorCores on v7x. Per-step VMEM at tb=1024 is ~7 MiB, safely
    # under the 32 MiB scoped limit (and v7x's 64 MiB physical VMEM). Partial trailing
    # blocks are fine: rows are independent and OOB rows are never written back.
    if B <= min_split_rows:
        tb = B
    else:
        tb = min(block_rows, _round_up(pl.cdiv(B, 2), 8))
    grid = (pl.cdiv(B, tb),)

    # Advisory cost estimate so XLA can schedule/overlap this small custom call.
    x_bytes = x_flat.dtype.itemsize
    out_bytes = np.dtype(out_dtype).itemsize
    weight_bytes = sum(int(np.prod(kp[k].shape)) * kp[k].dtype.itemsize
                       for k in ("v1", "b1", "v2", "b2", "w3", "b3"))
    cost = pl.CostEstimate(
        flops=2 * B * (K1 * n1 + (n1 // 4) * n2 + (n2 // 4) * E_pad),
        transcendentals=0,
        bytes_accessed=int(B * (K1 * x_bytes + E_pad * out_bytes) + weight_bytes),
    )

    y_pad = pl.pallas_call(
        _convnet_kernel,
        out_shape=jax.ShapeDtypeStruct((B, E_pad), out_dtype),
        grid=grid,
        in_specs=[
            pl.BlockSpec((tb, K1), lambda i: (i, 0)),          # x rows: tiled
            pl.BlockSpec(kp["v1"].shape, lambda i: (0, 0)),    # weights: resident
            pl.BlockSpec(kp["b1"].shape, lambda i: (0, 0)),
            pl.BlockSpec(kp["v2"].shape, lambda i: (0, 0)),
            pl.BlockSpec(kp["b2"].shape, lambda i: (0, 0)),
            pl.BlockSpec(kp["w3"].shape, lambda i: (0, 0)),
            pl.BlockSpec(kp["b3"].shape, lambda i: (0, 0)),
        ],
        out_specs=pl.BlockSpec((tb, E_pad), lambda i: (i, 0)),
        compiler_params=pltpu.CompilerParams(
            dimension_semantics=("parallel",),                 # shard row tiles across TCs
            vmem_limit_bytes=32 * 1024 * 1024,
        ),
        cost_estimate=cost,
    )(x_flat, kp["v1"], kp["b1"], kp["v2"], kp["b2"], kp["w3"], kp["b3"])

    return y_pad[:, :embed_dim]                                # strip zero lane padding


# ---------------------------------------------------------------------------
# Plain JAX/XLA reference (float32) and deterministic torch-layout parameter init.
# ---------------------------------------------------------------------------
def conv_network_reference(params, x_nchw):
    x = jnp.transpose(x_nchw, (0, 2, 3, 1)).astype(jnp.float32)

    def block(x, w, b):
        y = jax.lax.conv_general_dilated(
            x, jnp.transpose(w, (2, 3, 1, 0)), window_strides=(1, 1), padding="SAME",
            dimension_numbers=("NHWC", "HWIO", "NHWC"))
        y = jnp.maximum(y + b.reshape(1, 1, 1, -1), 0.0)
        return jax.lax.reduce_window(y, -jnp.inf, jax.lax.max,
                                     (1, 2, 2, 1), (1, 2, 2, 1), "VALID")

    h1 = block(x, params["w1"], params["b1"])
    h2 = block(h1, params["w2"], params["b2"])
    h2_flat = h2.reshape(h2.shape[0], -1)
    return jnp.maximum(h2_flat @ params["w3"].T + params["b3"], 0.0)


def init_params(key, cell_dim, embed_dim):
    ks = jax.random.split(key, 6)

    def u(k, shape, fan_in):
        bound = 1.0 / np.sqrt(fan_in)
        return jax.random.uniform(k, shape, jnp.float32, -bound, bound)

    return {
        "w1": u(ks[0], (32, cell_dim, 3, 3), cell_dim * 9),   # torch Conv2d layouts
        "b1": u(ks[1], (32,), cell_dim * 9),
        "w2": u(ks[2], (32, 32, 3, 3), 32 * 9),
        "b2": u(ks[3], (32,), 32 * 9),
        "w3": u(ks[4], (embed_dim, 32), 32),                  # torch Linear (out, in)
        "b3": u(ks[5], (embed_dim,), 32),
    }


if __name__ == "__main__":
    # 4x4 spatial -> 2x2 -> 1x1 after the two 2x2 max-pools, so the flatten is exactly
    # 32, matching nn.Linear(32, embed_dim).
    B, cell_dim, H, W = 2, 4, 4, 4
    embed_dim = 32

    key = jax.random.PRNGKey(0)
    pkey, xkey = jax.random.split(key)
    params = init_params(pkey, cell_dim, embed_dim)
    x = jax.random.normal(xkey, (B, cell_dim, H, W), jnp.float32)        # NCHW input

    kparams = prepare_params(params)          # one-time weight folding / padding / bf16
    fwd = jax.jit(lambda kp, xx: conv_network_forward(kp, xx, embed_dim=embed_dim))

    # Small deployment-shaped batch (single grid step).
    y = jax.block_until_ready(fwd(kparams, x))
    y_ref = conv_network_reference(params, x)
    assert y.shape == (B, embed_dim)
    np.testing.assert_allclose(np.asarray(y), np.asarray(y_ref), atol=2e-2, rtol=2e-2)

    # Larger batch exercising the row-tiled grid (>=2 steps, incl. a partial block).
    x_big = jax.random.normal(jax.random.PRNGKey(1), (300, cell_dim, H, W), jnp.float32)
    y_big = jax.block_until_ready(fwd(kparams, x_big))
    y_big_ref = conv_network_reference(params, x_big)
    assert y_big.shape == (300, embed_dim)
    np.testing.assert_allclose(np.asarray(y_big), np.asarray(y_big_ref),
                               atol=2e-2, rtol=2e-2)

    print("KERNEL_OK")
</pallas_src>

<mosaic_0001>
module attributes {stable_mosaic.version = 11 : i64} {
  func.func @_convnet_kernel(%arg0: i32, %arg1: memref<2x64xf32, #tpu.memory_space<vmem>>, %arg2: memref<64x512xbf16, #tpu.memory_space<vmem>>, %arg3: memref<1x512xf32, #tpu.memory_space<vmem>>, %arg4: memref<128x512xbf16, #tpu.memory_space<vmem>>, %arg5: memref<1x512xf32, #tpu.memory_space<vmem>>, %arg6: memref<128x128xbf16, #tpu.memory_space<vmem>>, %arg7: memref<1x128xf32, #tpu.memory_space<vmem>>, %arg8: memref<2x128xf32, #tpu.memory_space<vmem>>) attributes {dimension_semantics = [#tpu.dimension_semantics<parallel>], iteration_bounds = array<i64: 1>, scalar_prefetch = 0 : i64, scratch_operands = 0 : i64, tpu.core_type = #tpu.core_type<tc>, window_params = [{transform_indices = @transform_0, window_bounds = array<i64: 2, 64>}, {pipeline_mode = #tpu.pipeline_mode<synchronous>, transform_indices = @transform_1, window_bounds = array<i64: 64, 512>}, {pipeline_mode = #tpu.pipeline_mode<synchronous>, transform_indices = @transform_2, window_bounds = array<i64: 1, 512>}, {pipeline_mode = #tpu.pipeline_mode<synchronous>, transform_indices = @transform_3, window_bounds = array<i64: 128, 512>}, {pipeline_mode = #tpu.pipeline_mode<synchronous>, transform_indices = @transform_4, window_bounds = array<i64: 1, 512>}, {pipeline_mode = #tpu.pipeline_mode<synchronous>, transform_indices = @transform_5, window_bounds = array<i64: 128, 128>}, {pipeline_mode = #tpu.pipeline_mode<synchronous>, transform_indices = @transform_6, window_bounds = array<i64: 1, 128>}, {transform_indices = @transform_7, window_bounds = array<i64: 2, 128>}]} {
    %c0 = arith.constant 0 : index
    %c0_0 = arith.constant 0 : index
    %0 = vector.load %arg1[%c0, %c0_0] : memref<2x64xf32, #tpu.memory_space<vmem>>, vector<2x64xf32>
    %1 = arith.truncf %0 : vector<2x64xf32> to vector<2x64xbf16>
    %c0_1 = arith.constant 0 : index
    %c0_2 = arith.constant 0 : index
    %2 = vector.load %arg2[%c0_1, %c0_2] : memref<64x512xbf16, #tpu.memory_space<vmem>>, vector<64x512xbf16>
    %cst = arith.constant dense<0.000000e+00> : vector<2x512xf32>
    %3 = tpu.matmul %1, %2, %cst {dimension_numbers = #tpu.dot_dimension_numbers<[1], [0], [0], [1], [0, 0, 1, 1], [], []>} : vector<2x64xbf16>, vector<64x512xbf16>, vector<2x512xf32> -> vector<2x512xf32>
    %c0_3 = arith.constant 0 : index
    %c0_4 = arith.constant 0 : index
    %4 = vector.load %arg3[%c0_3, %c0_4] : memref<1x512xf32, #tpu.memory_space<vmem>>, vector<1x512xf32>
    %5 = vector.broadcast %4 : vector<1x512xf32> to vector<2x512xf32>
    %6 = arith.addf %3, %5 : vector<2x512xf32>
    %cst_5 = arith.constant 0.000000e+00 : f32
    %7 = vector.broadcast %cst_5 : f32 to vector<2x512xf32>
    %8 = arith.maximumf %6, %7 : vector<2x512xf32>
    %9 = vector.extract_strided_slice %8 {offsets = [0, 0], sizes = [2, 128], strides = [1, 1]} : vector<2x512xf32> to vector<2x128xf32>
    %10 = vector.extract_strided_slice %8 {offsets = [0, 128], sizes = [2, 128], strides = [1, 1]} : vector<2x512xf32> to vector<2x128xf32>
    %11 = arith.maximumf %9, %10 : vector<2x128xf32>
    %12 = vector.extract_strided_slice %8 {offsets = [0, 256], sizes = [2, 128], strides = [1, 1]} : vector<2x512xf32> to vector<2x128xf32>
    %13 = vector.extract_strided_slice %8 {offsets = [0, 384], sizes = [2, 128], strides = [1, 1]} : vector<2x512xf32> to vector<2x128xf32>
    %14 = arith.maximumf %12, %13 : vector<2x128xf32>
    %15 = arith.maximumf %11, %14 : vector<2x128xf32>
    %16 = arith.truncf %15 : vector<2x128xf32> to vector<2x128xbf16>
    %c0_6 = arith.constant 0 : index
    %c0_7 = arith.constant 0 : index
    %17 = vector.load %arg4[%c0_6, %c0_7] : memref<128x512xbf16, #tpu.memory_space<vmem>>, vector<128x512xbf16>
    %cst_8 = arith.constant dense<0.000000e+00> : vector<2x512xf32>
    %18 = tpu.matmul %16, %17, %cst_8 {dimension_numbers = #tpu.dot_dimension_numbers<[1], [0], [0], [1], [0, 0, 1, 1], [], []>} : vector<2x128xbf16>, vector<128x512xbf16>, vector<2x512xf32> -> vector<2x512xf32>
    %c0_9 = arith.constant 0 : index
    %c0_10 = arith.constant 0 : index
    %19 = vector.load %arg5[%c0_9, %c0_10] : memref<1x512xf32, #tpu.memory_space<vmem>>, vector<1x512xf32>
    %20 = vector.broadcast %19 : vector<1x512xf32> to vector<2x512xf32>
    %21 = arith.addf %18, %20 : vector<2x512xf32>
    %cst_11 = arith.constant 0.000000e+00 : f32
    %22 = vector.broadcast %cst_11 : f32 to vector<2x512xf32>
    %23 = arith.maximumf %21, %22 : vector<2x512xf32>
    %24 = vector.extract_strided_slice %23 {offsets = [0, 0], sizes = [2, 128], strides = [1, 1]} : vector<2x512xf32> to vector<2x128xf32>
    %25 = vector.extract_strided_slice %23 {offsets = [0, 128], sizes = [2, 128], strides = [1, 1]} : vector<2x512xf32> to vector<2x128xf32>
    %26 = arith.maximumf %24, %25 : vector<2x128xf32>
    %27 = vector.extract_strided_slice %23 {offsets = [0, 256], sizes = [2, 128], strides = [1, 1]} : vector<2x512xf32> to vector<2x128xf32>
    %28 = vector.extract_strided_slice %23 {offsets = [0, 384], sizes = [2, 128], strides = [1, 1]} : vector<2x512xf32> to vector<2x128xf32>
    %29 = arith.maximumf %27, %28 : vector<2x128xf32>
    %30 = arith.maximumf %26, %29 : vector<2x128xf32>
    %31 = arith.truncf %30 : vector<2x128xf32> to vector<2x128xbf16>
    %c0_12 = arith.constant 0 : index
    %c0_13 = arith.constant 0 : index
    %32 = vector.load %arg6[%c0_12, %c0_13] : memref<128x128xbf16, #tpu.memory_space<vmem>>, vector<128x128xbf16>
    %cst_14 = arith.constant dense<0.000000e+00> : vector<2x128xf32>
    %33 = tpu.matmul %31, %32, %cst_14 {dimension_numbers = #tpu.dot_dimension_numbers<[1], [0], [0], [1], [0, 0, 1, 1], [], []>} : vector<2x128xbf16>, vector<128x128xbf16>, vector<2x128xf32> -> vector<2x128xf32>
    %c0_15 = arith.constant 0 : index
    %c0_16 = arith.constant 0 : index
    %34 = vector.load %arg7[%c0_15, %c0_16] : memref<1x128xf32, #tpu.memory_space<vmem>>, vector<1x128xf32>
    %35 = vector.broadcast %34 : vector<1x128xf32> to vector<2x128xf32>
    %36 = arith.addf %33, %35 : vector<2x128xf32>
    %cst_17 = arith.constant 0.000000e+00 : f32
    %37 = vector.broadcast %cst_17 : f32 to vector<2x128xf32>
    %38 = arith.maximumf %36, %37 : vector<2x128xf32>
    %c0_18 = arith.constant 0 : index
    %c0_19 = arith.constant 0 : index
    %39 = vector.load %arg8[%c0_18, %c0_19] : memref<2x128xf32, #tpu.memory_space<vmem>>, vector<2x128xf32>
    tpu.vector_store %arg8[%c0_18, %c0_19], %38 {strides = array<i32>} : memref<2x128xf32, #tpu.memory_space<vmem>>, vector<2x128xf32>,
    return
  }
  func.func @transform_0(%arg0: i32) -> (i32, i32) {
    %c0_i32 = arith.constant 0 : i32
    %c0_i32_0 = arith.constant 0 : i32
    return %arg0, %c0_i32 : i32, i32
  }
  func.func @transform_1(%arg0: i32) -> (i32, i32) {
    %c0_i32 = arith.constant 0 : i32
    %c0_i32_0 = arith.constant 0 : i32
    %c0_i32_1 = arith.constant 0 : i32
    return %c0_i32, %c0_i32_0 : i32, i32
  }
  func.func @transform_2(%arg0: i32) -> (i32, i32) {
    %c0_i32 = arith.constant 0 : i32
    %c0_i32_0 = arith.constant 0 : i32
    %c0_i32_1 = arith.constant 0 : i32
    return %c0_i32, %c0_i32_0 : i32, i32
  }
  func.func @transform_3(%arg0: i32) -> (i32, i32) {
    %c0_i32 = arith.constant 0 : i32
    %c0_i32_0 = arith.constant 0 : i32
    %c0_i32_1 = arith.constant 0 : i32
    return %c0_i32, %c0_i32_0 : i32, i32
  }
  func.func @transform_4(%arg0: i32) -> (i32, i32) {
    %c0_i32 = arith.constant 0 : i32
    %c0_i32_0 = arith.constant 0 : i32
    %c0_i32_1 = arith.constant 0 : i32
    return %c0_i32, %c0_i32_0 : i32, i32
  }
  func.func @transform_5(%arg0: i32) -> (i32, i32) {
    %c0_i32 = arith.constant 0 : i32
    %c0_i32_0 = arith.constant 0 : i32
    %c0_i32_1 = arith.constant 0 : i32
    return %c0_i32, %c0_i32_0 : i32, i32
  }
  func.func @transform_6(%arg0: i32) -> (i32, i32) {
    %c0_i32 = arith.constant 0 : i32
    %c0_i32_0 = arith.constant 0 : i32
    %c0_i32_1 = arith.constant 0 : i32
    return %c0_i32, %c0_i32_0 : i32, i32
  }
  func.func @transform_7(%arg0: i32) -> (i32, i32) {
    %c0_i32 = arith.constant 0 : i32
    %c0_i32_0 = arith.constant 0 : i32
    return %arg0, %c0_i32 : i32, i32
  }
}

</mosaic_0001>

<llo_original>
// kernel: _lambda_.1
$region0: #{_lambda_.1}
  #allocation0 [shape = 'u32[]', space=smem, size = 0x4, offset = 0x4, fixed_abs, tag = 'smem constant byte address 0x4 - core index']
  #allocation1 [shape = 'u32[72,128]{1,0:T(1,128)}', space=vmem, size = 0x9000, scoped, tag = 'internal scratch']
  %s0 = inlined_call_operand.vmem [shape: f32[2,64], index: 0, kind: input, shape index: {}]
  %s1 = inlined_call_operand.hbm [shape: bf16[64,512], index: 1, kind: input, shape index: {}]
  %s2 = inlined_call_operand.vmem [shape: f32[1,512], index: 2, kind: input, shape index: {}]
  %s3 = inlined_call_operand.hbm [shape: bf16[128,512], index: 3, kind: input, shape index: {}]
  %s4 = inlined_call_operand.vmem [shape: f32[1,512], index: 4, kind: input, shape index: {}]
  %s5 = inlined_call_operand.hbm [shape: bf16[128,128], index: 5, kind: input, shape index: {}]
  %s6 = inlined_call_operand.vmem [shape: f32[1,128], index: 6, kind: input, shape index: {}]
  %s7 = inlined_call_operand.hbm [shape: f32[2,128], index: 7, kind: output, shape index: {}]
  %s8 = sld [smem:[#allocation0]]
  $region50: #{_lambda_.1} parent=0
    _
  %s10 = ssub.s32 1, %s8
  %s11 = scalar_select 0, %s10, %s8
  $region1: #{_lambda_.1} parent=0
    #allocation2 [shape = 'u8[65536]{0}', space=vmem, size = 0x10000, scoped, tag = 'input window, operand 1, single buffered']
    #allocation3 [shape = 's32[1]{0}', space=sflag, size = 0x4, scoped, tag = 'scoped memory for _lambda_.1']
    #allocation4 [shape = 's32[1]{0}', space=sflag, size = 0x4, scoped, tag = 'scoped memory for _lambda_.1']
    #allocation5 [shape = 'u8[131072]{0}', space=vmem, size = 0x20000, scoped, tag = 'input window, operand 3, single buffered']
    #allocation6 [shape = 's32[1]{0}', space=sflag, size = 0x4, scoped, tag = 'scoped memory for _lambda_.1']
    #allocation7 [shape = 'u8[32768]{0}', space=vmem, size = 0x8000, scoped, tag = 'input window, operand 5, single buffered']
    #allocation8 [shape = 'u8[1024]{0}', space=vmem, size = 0x400, scoped, tag = 'output window, operand 0, single buffered']
    %12 = vsyncpa [#allocation3], 0
    %13 = vsyncpa [#allocation6], 0
    %14 = vsyncpa [#allocation4], 0
    // Predicated region
    $region2: #{_lambda_.1} parent=1 // pred_check
      _
    $region3: #{_lambda_.1} parent=1 // pred_check_branch
      %16 = sbr.rel (0) target = $region5
    $region4: #{_lambda_.1} parent=1 // pred_region
      _
    $region5: #{_lambda_.1} parent=1 // pred_fallthru
      _
    // Predicated region
    $region6: #{_lambda_.1} parent=1 // pred_check
      _
    $region7: #{_lambda_.1} parent=1 // pred_check_branch
      %18 = sbr.rel (0) target = $region9
    $region8: #{_lambda_.1} parent=1 // pred_region
      %20 = vsyncadd [#allocation3], 0
      %s21 = sshll.u32 %s1, 4
      %s22 = int_to_ptr.hbm [resolvable:$true] %s21
      %s23 = sshll.u32 [#allocation2], 4
      %s24 = int_to_ptr.vmem [resolvable:$true] %s23
      %29 = dma.hbm_to_vmem [thread:$0]  %s22, 2048, %s24, [#allocation3], 256, 256, 16
    $region9: #{_lambda_.1} parent=1 // pred_fallthru
      _
    // Predicated region
    $region10: #{_lambda_.1} parent=1 // pred_check
      _
    $region11: #{_lambda_.1} parent=1 // pred_check_branch
      %31 = sbr.rel (0) target = $region13
    $region12: #{_lambda_.1} parent=1 // pred_region
      _
    $region13: #{_lambda_.1} parent=1 // pred_fallthru
      _
    // Predicated region
    $region14: #{_lambda_.1} parent=1 // pred_check
      _
    $region15: #{_lambda_.1} parent=1 // pred_check_branch
      %33 = sbr.rel (0) target = $region17
    $region16: #{_lambda_.1} parent=1 // pred_region
      %35 = vsyncadd [#allocation6], 0
      %s36 = sshll.u32 %s3, 4
      %s37 = int_to_ptr.hbm [resolvable:$true] %s36
      %s38 = sshll.u32 [#allocation5], 4
      %s39 = int_to_ptr.vmem [resolvable:$true] %s38
      %44 = dma.hbm_to_vmem [thread:$0]  %s37, 4096, %s39, [#allocation6], 256, 256, 16
    $region17: #{_lambda_.1} parent=1 // pred_fallthru
      _
    // Predicated region
    $region18: #{_lambda_.1} parent=1 // pred_check
      _
    $region19: #{_lambda_.1} parent=1 // pred_check_branch
      %46 = sbr.rel (0) target = $region21
    $region20: #{_lambda_.1} parent=1 // pred_region
      _
    $region21: #{_lambda_.1} parent=1 // pred_fallthru
      _
    // Predicated region
    $region22: #{_lambda_.1} parent=1 // pred_check
      _
    $region23: #{_lambda_.1} parent=1 // pred_check_branch
      %48 = sbr.rel (0) target = $region25
    $region24: #{_lambda_.1} parent=1 // pred_region
      %50 = vsyncadd [#allocation6], 0
      %s51 = sshll.u32 %s5, 4
      %s52 = int_to_ptr.hbm [resolvable:$true] %s51
      %s53 = sshll.u32 [#allocation7], 4
      %s54 = int_to_ptr.vmem [resolvable:$true] %s53
      %59 = dma.hbm_to_vmem [thread:$0]  %s52, 1024, %s54, [#allocation6], 64, 64, 4
    $region25: #{_lambda_.1} parent=1 // pred_fallthru
      _
    // Predicated region
    $region26: #{_lambda_.1} parent=1 // pred_check
      _
    $region27: #{_lambda_.1} parent=1 // pred_check_branch
      %61 = sbr.rel (0) target = $region29
    $region28: #{_lambda_.1} parent=1 // pred_region
      _
    $region29: #{_lambda_.1} parent=1 // pred_fallthru
      _
    // Predicated region
    $region30: #{_lambda_.1} parent=1 // pred_check
      _
    $region31: #{_lambda_.1} parent=1 // pred_check_branch
      %63 = sbr.rel (0) target = $region33
    $region32: #{_lambda_.1} parent=1 // pred_region
      %65 = dma.done [#allocation3], 2048
    $region33: #{_lambda_.1} parent=1 // pred_fallthru
      _
    // Predicated region
    $region34: #{_lambda_.1} parent=1 // pred_check
      _
    $region35: #{_lambda_.1} parent=1 // pred_check_branch
      %67 = sbr.rel (0) target = $region37
    $region36: #{_lambda_.1} parent=1 // pred_region
      %69 = dma.done [#allocation6], 4096
    $region37: #{_lambda_.1} parent=1 // pred_fallthru
      _
    // Predicated region
    $region38: #{_lambda_.1} parent=1 // pred_check
      _
    $region39: #{_lambda_.1} parent=1 // pred_check_branch
      %71 = sbr.rel (0) target = $region41
    $region40: #{_lambda_.1} parent=1 // pred_region
      %73 = dma.done [#allocation6], 1024
    $region41: #{_lambda_.1} parent=1 // pred_fallthru
      _
    %v75 = vld [vmem:[%s0] sm:$0x3]
    %v76 = vpack.c.bf16 %v75, %v75
    %v77 = vld [vmem:[#allocation2] sm:$0xff]
    %v78 = vld [vmem:[#allocation2 + $0x8] sm:$0xff]
    %v79 = vld [vmem:[#allocation2 + $0x10] sm:$0xff]
    %v80 = vld [vmem:[#allocation2 + $0x18] sm:$0xff]
    %v81 = vld [vmem:[#allocation2 + $0x20] sm:$0xff]
    %v82 = vld [vmem:[#allocation2 + $0x28] sm:$0xff]
    %v83 = vld [vmem:[#allocation2 + $0x30] sm:$0xff]
    %v84 = vld [vmem:[#allocation2 + $0x38] sm:$0xff]
    %v85 = vld [vmem:[#allocation2 + $0x40] sm:$0xff]
    %v86 = vld [vmem:[#allocation2 + $0x48] sm:$0xff]
    %v87 = vld [vmem:[#allocation2 + $0x50] sm:$0xff]
    %v88 = vld [vmem:[#allocation2 + $0x58] sm:$0xff]
    %v89 = vld [vmem:[#allocation2 + $0x60] sm:$0xff]
    %v90 = vld [vmem:[#allocation2 + $0x68] sm:$0xff]
    %v91 = vld [vmem:[#allocation2 + $0x70] sm:$0xff]
    %v92 = vld [vmem:[#allocation2 + $0x78] sm:$0xff]
    %v93 = vld [vmem:[%s2] sm:$0xf]
    %v95 = vperm.slane %v93, 0
    %v96 = vperm.slane %v93, 1
    %v97 = vperm.slane %v93, 2
    %v98 = vperm.slane %v93, 3
    %v119 = vunpack.c.l.b16 %v77
    %v120 = vunpack.c.h.b16 %v77
    %v121 = vunpack.c.l.b16 %v78
    %v122 = vunpack.c.h.b16 %v78
    %v123 = vunpack.c.l.b16 %v79
    %v124 = vunpack.c.h.b16 %v79
    %v125 = vunpack.c.l.b16 %v80
    %v126 = vunpack.c.h.b16 %v80
    %v127 = vunpack.c.l.b16 %v81
    %v128 = vunpack.c.h.b16 %v81
    %v129 = vunpack.c.l.b16 %v82
    %v130 = vunpack.c.h.b16 %v82
    %v131 = vunpack.c.l.b16 %v83
    %v132 = vunpack.c.h.b16 %v83
    %v133 = vunpack.c.l.b16 %v84
    %v134 = vunpack.c.h.b16 %v84
    %v135 = vunpack.c.l.b16 %v85
    %v136 = vunpack.c.h.b16 %v85
    %v137 = vunpack.c.l.b16 %v86
    %v138 = vunpack.c.h.b16 %v86
    %v139 = vunpack.c.l.b16 %v87
    %v140 = vunpack.c.h.b16 %v87
    %v141 = vunpack.c.l.b16 %v88
    %v142 = vunpack.c.h.b16 %v88
    %v143 = vunpack.c.l.b16 %v89
    %v144 = vunpack.c.h.b16 %v89
    %v145 = vunpack.c.l.b16 %v90
    %v146 = vunpack.c.h.b16 %v90
    %v147 = vunpack.c.l.b16 %v91
    %v148 = vunpack.c.h.b16 %v91
    %v149 = vunpack.c.l.b16 %v92
    %v150 = vunpack.c.h.b16 %v92
    %v151 = vpack.c.b16 %v123, %v119
    %v152 = vpack.c.b16 %v124, %v120
    %v153 = vpack.c.b16 %v125, %v121
    %v154 = vpack.c.b16 %v126, %v122
    %v155 = vpack.c.b16 %v131, %v127
    %v156 = vpack.c.b16 %v132, %v128
    %v157 = vpack.c.b16 %v133, %v129
    %v158 = vpack.c.b16 %v134, %v130
    %v159 = vpack.c.b16 %v139, %v135
    %v160 = vpack.c.b16 %v140, %v136
    %v161 = vpack.c.b16 %v141, %v137
    %v162 = vpack.c.b16 %v142, %v138
    %v163 = vpack.c.b16 %v147, %v143
    %v164 = vpack.c.b16 %v148, %v144
    %v165 = vpack.c.b16 %v149, %v145
    %v166 = vpack.c.b16 %v150, %v146
    %vm183 = vcmask 523264
    %v185 = vsel %vm183, %v76, 0
    %187 = vmatpush.bf16.msra.mxu0 0
    %188 = vmatpush.bf16.msra.mxu0 0
    %189 = vmatpush.bf16.msra.mxu0 0
    %190 = vmatpush.bf16.msra.mxu0 0
    %191 = vmatpush.bf16.msra.mxu0 %v163
    %192 = vmatpush.bf16.msra.mxu0 %v159
    %193 = vmatpush.bf16.msra.mxu0 %v155
    %194 = vmatpush.bf16.msra.mxu0 %v151
    %195 = vmatmul.bf16.gmra.mxu0 %v185
    %v196 = vpop.f32.mrf.mxu0
    %v197 = vadd.f32 %v95, %v196
    %v198 = vpop.f32.mrf.mxu0
    %199 = vdwg.mxu0
    %200 = vmatpush.bf16.msra.mxu0 0
    %201 = vmatpush.bf16.msra.mxu0 0
    %202 = vmatpush.bf16.msra.mxu0 0
    %203 = vmatpush.bf16.msra.mxu0 0
    %204 = vmatpush.bf16.msra.mxu0 %v164
    %205 = vmatpush.bf16.msra.mxu0 %v160
    %206 = vmatpush.bf16.msra.mxu0 %v156
    %207 = vmatpush.bf16.msra.mxu0 %v152
    %208 = vmatmul.bf16.gmra.mxu0 %v185
    %v209 = vpop.f32.mrf.mxu0
    %v210 = vadd.f32 %v96, %v209
    %v211 = vpop.f32.mrf.mxu0
    %212 = vdwg.mxu0
    %213 = vmatpush.bf16.msra.mxu0 0
    %214 = vmatpush.bf16.msra.mxu0 0
    %215 = vmatpush.bf16.msra.mxu0 0
    %216 = vmatpush.bf16.msra.mxu0 0
    %217 = vmatpush.bf16.msra.mxu0 %v165
    %218 = vmatpush.bf16.msra.mxu0 %v161
    %219 = vmatpush.bf16.msra.mxu0 %v157
    %220 = vmatpush.bf16.msra.mxu0 %v153
    %221 = vmatmul.bf16.gmra.mxu0 %v185
    %v222 = vpop.f32.mrf.mxu0
    %v223 = vadd.f32 %v97, %v222
    %v224 = vpop.f32.mrf.mxu0
    %225 = vdwg.mxu0
    %226 = vmatpush.bf16.msra.mxu0 0
    %227 = vmatpush.bf16.msra.mxu0 0
    %228 = vmatpush.bf16.msra.mxu0 0
    %229 = vmatpush.bf16.msra.mxu0 0
    %230 = vmatpush.bf16.msra.mxu0 %v166
    %231 = vmatpush.bf16.msra.mxu0 %v162
    %232 = vmatpush.bf16.msra.mxu0 %v158
    %233 = vmatpush.bf16.msra.mxu0 %v154
    %234 = vmatmul.bf16.gmra.mxu0 %v185
    %v235 = vpop.f32.mrf.mxu0
    %v236 = vadd.f32 %v98, %v235
    %v237 = vpop.f32.mrf.mxu0
    %238 = vdwg.mxu0
    %v239 = vmax.f32 %v197, 0.0
    %v240 = vmax.f32 %v210, 0.0
    %v241 = vmax.f32 %v223, 0.0
    %v242 = vmax.f32 %v236, 0.0
    %v243 = vmax.f32 %v239, %v240
    %v244 = vmax.f32 %v241, %v242
    %v245 = vmax.f32 %v243, %v244
    %v246 = vpack.c.bf16 %v245, %v245
    %v247 = vld [vmem:[#allocation5] sm:$0xff]
    %v248 = vld [vmem:[#allocation5 + $0x8] sm:$0xff]
    %v249 = vld [vmem:[#allocation5 + $0x10] sm:$0xff]
    %v250 = vld [vmem:[#allocation5 + $0x18] sm:$0xff]
    %v251 = vld [vmem:[#allocation5 + $0x20] sm:$0xff]
    %v252 = vld [vmem:[#allocation5 + $0x28] sm:$0xff]
    %v253 = vld [vmem:[#allocation5 + $0x30] sm:$0xff]
    %v254 = vld [vmem:[#allocation5 + $0x38] sm:$0xff]
    %v255 = vld [vmem:[#allocation5 + $0x40] sm:$0xff]
    %v256 = vld [vmem:[#allocation5 + $0x48] sm:$0xff]
    %v257 = vld [vmem:[#allocation5 + $0x50] sm:$0xff]
    %v258 = vld [vmem:[#allocation5 + $0x58] sm:$0xff]
    %v259 = vld [vmem:[#allocation5 + $0x60] sm:$0xff]
    %v260 = vld [vmem:[#allocation5 + $0x68] sm:$0xff]
    %v261 = vld [vmem:[#allocation5 + $0x70] sm:$0xff]
    %v262 = vld [vmem:[#allocation5 + $0x78] sm:$0xff]
    %v263 = vld [vmem:[#allocation5 + $0x80] sm:$0xff]
    %v264 = vld [vmem:[#allocation5 + $0x88] sm:$0xff]
    %v265 = vld [vmem:[#allocation5 + $0x90] sm:$0xff]
    %v266 = vld [vmem:[#allocation5 + $0x98] sm:$0xff]
    %v267 = vld [vmem:[#allocation5 + $0xa0] sm:$0xff]
    %v268 = vld [vmem:[#allocation5 + $0xa8] sm:$0xff]
    %v269 = vld [vmem:[#allocation5 + $0xb0] sm:$0xff]
    %v270 = vld [vmem:[#allocation5 + $0xb8] sm:$0xff]
    %v271 = vld [vmem:[#allocation5 + $0xc0] sm:$0xff]
    %v272 = vld [vmem:[#allocation5 + $0xc8] sm:$0xff]
    %v273 = vld [vmem:[#allocation5 + $0xd0] sm:$0xff]
    %v274 = vld [vmem:[#allocation5 + $0xd8] sm:$0xff]
    %v275 = vld [vmem:[#allocation5 + $0xe0] sm:$0xff]
    %v276 = vld [vmem:[#allocation5 + $0xe8] sm:$0xff]
    %v277 = vld [vmem:[#allocation5 + $0xf0] sm:$0xff]
    %v278 = vld [vmem:[#allocation5 + $0xf8] sm:$0xff]
    %v279 = vld [vmem:[%s4] sm:$0xf]
    %v281 = vperm.slane %v279, 0
    %v282 = vperm.slane %v279, 1
    %v283 = vperm.slane %v279, 2
    %v284 = vperm.slane %v279, 3
    %v321 = vunpack.c.l.b16 %v247
    %v322 = vunpack.c.h.b16 %v247
    %v323 = vunpack.c.l.b16 %v248
    %v324 = vunpack.c.h.b16 %v248
    %v325 = vunpack.c.l.b16 %v249
    %v326 = vunpack.c.h.b16 %v249
    %v327 = vunpack.c.l.b16 %v250
    %v328 = vunpack.c.h.b16 %v250
    %v329 = vunpack.c.l.b16 %v251
    %v330 = vunpack.c.h.b16 %v251
    %v331 = vunpack.c.l.b16 %v252
    %v332 = vunpack.c.h.b16 %v252
    %v333 = vunpack.c.l.b16 %v253
    %v334 = vunpack.c.h.b16 %v253
    %v335 = vunpack.c.l.b16 %v254
    %v336 = vunpack.c.h.b16 %v254
    %v337 = vunpack.c.l.b16 %v255
    %v338 = vunpack.c.h.b16 %v255
    %v339 = vunpack.c.l.b16 %v256
    %v340 = vunpack.c.h.b16 %v256
    %v341 = vunpack.c.l.b16 %v257
    %v342 = vunpack.c.h.b16 %v257
    %v343 = vunpack.c.l.b16 %v258
    %v344 = vunpack.c.h.b16 %v258
    %v345 = vunpack.c.l.b16 %v259
    %v346 = vunpack.c.h.b16 %v259
    %v347 = vunpack.c.l.b16 %v260
    %v348 = vunpack.c.h.b16 %v260
    %v349 = vunpack.c.l.b16 %v261
    %v350 = vunpack.c.h.b16 %v261
    %v351 = vunpack.c.l.b16 %v262
    %v352 = vunpack.c.h.b16 %v262
    %v353 = vunpack.c.l.b16 %v263
    %v354 = vunpack.c.h.b16 %v263
    %v355 = vunpack.c.l.b16 %v264
    %v356 = vunpack.c.h.b16 %v264
    %v357 = vunpack.c.l.b16 %v265
    %v358 = vunpack.c.h.b16 %v265
    %v359 = vunpack.c.l.b16 %v266
    %v360 = vunpack.c.h.b16 %v266
    %v361 = vunpack.c.l.b16 %v267
    %v362 = vunpack.c.h.b16 %v267
    %v363 = vunpack.c.l.b16 %v268
    %v364 = vunpack.c.h.b16 %v268
    %v365 = vunpack.c.l.b16 %v269
    %v366 = vunpack.c.h.b16 %v269
    %v367 = vunpack.c.l.b16 %v270
    %v368 = vunpack.c.h.b16 %v270
    %v369 = vunpack.c.l.b16 %v271
    %v370 = vunpack.c.h.b16 %v271
    %v371 = vunpack.c.l.b16 %v272
    %v372 = vunpack.c.h.b16 %v272
    %v373 = vunpack.c.l.b16 %v273
    %v374 = vunpack.c.h.b16 %v273
    %v375 = vunpack.c.l.b16 %v274
    %v376 = vunpack.c.h.b16 %v274
    %v377 = vunpack.c.l.b16 %v275
    %v378 = vunpack.c.h.b16 %v275
    %v379 = vunpack.c.l.b16 %v276
    %v380 = vunpack.c.h.b16 %v276
    %v381 = vunpack.c.l.b16 %v277
    %v382 = vunpack.c.h.b16 %v277
    %v383 = vunpack.c.l.b16 %v278
    %v384 = vunpack.c.h.b16 %v278
    %v385 = vpack.c.b16 %v325, %v321
    %v386 = vpack.c.b16 %v326, %v322
    %v387 = vpack.c.b16 %v327, %v323
    %v388 = vpack.c.b16 %v328, %v324
    %v389 = vpack.c.b16 %v333, %v329
    %v390 = vpack.c.b16 %v334, %v330
    %v391 = vpack.c.b16 %v335, %v331
    %v392 = vpack.c.b16 %v336, %v332
    %v393 = vpack.c.b16 %v341, %v337
    %v394 = vpack.c.b16 %v342, %v338
    %v395 = vpack.c.b16 %v343, %v339
    %v396 = vpack.c.b16 %v344, %v340
    %v397 = vpack.c.b16 %v349, %v345
    %v398 = vpack.c.b16 %v350, %v346
    %v399 = vpack.c.b16 %v351, %v347
    %v400 = vpack.c.b16 %v352, %v348
    %v401 = vpack.c.b16 %v357, %v353
    %v402 = vpack.c.b16 %v358, %v354
    %v403 = vpack.c.b16 %v359, %v355
    %v404 = vpack.c.b16 %v360, %v356
    %v405 = vpack.c.b16 %v365, %v361
    %v406 = vpack.c.b16 %v366, %v362
    %v407 = vpack.c.b16 %v367, %v363
    %v408 = vpack.c.b16 %v368, %v364
    %v409 = vpack.c.b16 %v373, %v369
    %v410 = vpack.c.b16 %v374, %v370
    %v411 = vpack.c.b16 %v375, %v371
    %v412 = vpack.c.b16 %v376, %v372
    %v413 = vpack.c.b16 %v381, %v377
    %v414 = vpack.c.b16 %v382, %v378
    %v415 = vpack.c.b16 %v383, %v379
    %v416 = vpack.c.b16 %v384, %v380
    %449 = vmatpush.bf16.msra.mxu0 %v413
    %450 = vmatpush.bf16.msra.mxu0 %v409
    %451 = vmatpush.bf16.msra.mxu0 %v405
    %452 = vmatpush.bf16.msra.mxu0 %v401
    %453 = vmatpush.bf16.msra.mxu0 %v397
    %454 = vmatpush.bf16.msra.mxu0 %v393
    %455 = vmatpush.bf16.msra.mxu0 %v389
    %456 = vmatpush.bf16.msra.mxu0 %v385
    %457 = vmatmul.bf16.gmra.mxu0 %v246
    %v458 = vpop.f32.mrf.mxu0
    %v459 = vadd.f32 %v281, %v458
    %v460 = vpop.f32.mrf.mxu0
    %461 = vdwg.mxu0
    %462 = vmatpush.bf16.msra.mxu0 %v414
    %463 = vmatpush.bf16.msra.mxu0 %v410
    %464 = vmatpush.bf16.msra.mxu0 %v406
    %465 = vmatpush.bf16.msra.mxu0 %v402
    %466 = vmatpush.bf16.msra.mxu0 %v398
    %467 = vmatpush.bf16.msra.mxu0 %v394
    %468 = vmatpush.bf16.msra.mxu0 %v390
    %469 = vmatpush.bf16.msra.mxu0 %v386
    %470 = vmatmul.bf16.gmra.mxu0 %v246
    %v471 = vpop.f32.mrf.mxu0
    %v472 = vadd.f32 %v282, %v471
    %v473 = vpop.f32.mrf.mxu0
    %474 = vdwg.mxu0
    %475 = vmatpush.bf16.msra.mxu0 %v415
    %476 = vmatpush.bf16.msra.mxu0 %v411
    %477 = vmatpush.bf16.msra.mxu0 %v407
    %478 = vmatpush.bf16.msra.mxu0 %v403
    %479 = vmatpush.bf16.msra.mxu0 %v399
    %480 = vmatpush.bf16.msra.mxu0 %v395
    %481 = vmatpush.bf16.msra.mxu0 %v391
    %482 = vmatpush.bf16.msra.mxu0 %v387
    %483 = vmatmul.bf16.gmra.mxu0 %v246
    %v484 = vpop.f32.mrf.mxu0
    %v485 = vadd.f32 %v283, %v484
    %v486 = vpop.f32.mrf.mxu0
    %487 = vdwg.mxu0
    %488 = vmatpush.bf16.msra.mxu0 %v416
    %489 = vmatpush.bf16.msra.mxu0 %v412
    %490 = vmatpush.bf16.msra.mxu0 %v408
    %491 = vmatpush.bf16.msra.mxu0 %v404
    %492 = vmatpush.bf16.msra.mxu0 %v400
    %493 = vmatpush.bf16.msra.mxu0 %v396
    %494 = vmatpush.bf16.msra.mxu0 %v392
    %495 = vmatpush.bf16.msra.mxu0 %v388
    %496 = vmatmul.bf16.gmra.mxu0 %v246
    %v497 = vpop.f32.mrf.mxu0
    %v498 = vadd.f32 %v284, %v497
    %v499 = vpop.f32.mrf.mxu0
    %500 = vdwg.mxu0
    %v501 = vmax.f32 %v459, 0.0
    %v502 = vmax.f32 %v472, 0.0
    %v503 = vmax.f32 %v485, 0.0
    %v504 = vmax.f32 %v498, 0.0
    %v505 = vmax.f32 %v501, %v502
    %v506 = vmax.f32 %v503, %v504
    %v507 = vmax.f32 %v505, %v506
    %v508 = vpack.c.bf16 %v507, %v507
    %v509 = vld [vmem:[#allocation7] sm:$0xf]
    %v510 = vld [vmem:[#allocation7 + $0x4] sm:$0xf]
    %v511 = vld [vmem:[#allocation7 + $0x8] sm:$0xf]
    %v512 = vld [vmem:[#allocation7 + $0xc] sm:$0xf]
    %v513 = vld [vmem:[#allocation7 + $0x10] sm:$0xf]
    %v514 = vld [vmem:[#allocation7 + $0x14] sm:$0xf]
    %v515 = vld [vmem:[#allocation7 + $0x18] sm:$0xf]
    %v516 = vld [vmem:[#allocation7 + $0x1c] sm:$0xf]
    %v517 = vld [vmem:[#allocation7 + $0x20] sm:$0xf]
    %v518 = vld [vmem:[#allocation7 + $0x24] sm:$0xf]
    %v519 = vld [vmem:[#allocation7 + $0x28] sm:$0xf]
    %v520 = vld [vmem:[#allocation7 + $0x2c] sm:$0xf]
    %v521 = vld [vmem:[#allocation7 + $0x30] sm:$0xf]
    %v522 = vld [vmem:[#allocation7 + $0x34] sm:$0xf]
    %v523 = vld [vmem:[#allocation7 + $0x38] sm:$0xf]
    %v524 = vld [vmem:[#allocation7 + $0x3c] sm:$0xf]
    %v525 = vld [vmem:[%s6] sm:$0x1]
    %v527 = vperm.slane %v525, 0
    %v545 = vunpack.c.l.b16 %v509
    %v546 = vunpack.c.l.b16 %v510
    %v547 = vunpack.c.l.b16 %v511
    %v548 = vunpack.c.l.b16 %v512
    %v549 = vunpack.c.l.b16 %v513
    %v550 = vunpack.c.l.b16 %v514
    %v551 = vunpack.c.l.b16 %v515
    %v552 = vunpack.c.l.b16 %v516
    %v553 = vunpack.c.l.b16 %v517
    %v554 = vunpack.c.l.b16 %v518
    %v555 = vunpack.c.l.b16 %v519
    %v556 = vunpack.c.l.b16 %v520
    %v557 = vunpack.c.l.b16 %v521
    %v558 = vunpack.c.l.b16 %v522
    %v559 = vunpack.c.l.b16 %v523
    %v560 = vunpack.c.l.b16 %v524
    %v561 = vpack.c.b16 %v546, %v545
    %v562 = vpack.c.b16 %v548, %v547
    %v563 = vpack.c.b16 %v550, %v549
    %v564 = vpack.c.b16 %v552, %v551
    %v565 = vpack.c.b16 %v554, %v553
    %v566 = vpack.c.b16 %v556, %v555
    %v567 = vpack.c.b16 %v558, %v557
    %v568 = vpack.c.b16 %v560, %v559
    %577 = vmatpush.bf16.msra.mxu0 %v568
    %578 = vmatpush.bf16.msra.mxu0 %v567
    %579 = vmatpush.bf16.msra.mxu0 %v566
    %580 = vmatpush.bf16.msra.mxu0 %v565
    %581 = vmatpush.bf16.msra.mxu0 %v564
    %582 = vmatpush.bf16.msra.mxu0 %v563
    %583 = vmatpush.bf16.msra.mxu0 %v562
    %584 = vmatpush.bf16.msra.mxu0 %v561
    %585 = vmatmul.bf16.gmra.mxu0 %v508
    %v586 = vpop.f32.mrf.mxu0
    %v587 = vadd.f32 %v527, %v586
    %v588 = vpop.f32.mrf.mxu0
    %589 = vdwg.mxu0
    %v590 = vmax.f32 %v587, 0.0
    %591 = vst [vmem:[#allocation8] sm:$0x3] %v590
    // Predicated region
    $region42: #{_lambda_.1} parent=1 // pred_check
      _
    $region43: #{_lambda_.1} parent=1 // pred_check_branch
      %593 = sbr.rel (0) target = $region45
    $region44: #{_lambda_.1} parent=1 // pred_region
      %595 = vsyncadd [#allocation4], 0
      %s597 = sshll.u32 [#allocation8], 4
      %s598 = int_to_ptr.vmem [resolvable:$true] %s597
      %s599 = sshll.u32 %s7, 4
      %s600 = int_to_ptr.hbm [resolvable:$true] %s599
      %602 = dma.vmem_to_hbm [thread:$0]  %s598, 32, %s600, [#allocation4]
    $region45: #{_lambda_.1} parent=1 // pred_fallthru
      _
    // Predicated region
    $region46: #{_lambda_.1} parent=1 // pred_check
      _
    $region47: #{_lambda_.1} parent=1 // pred_check_branch
      %604 = sbr.rel (0) target = $region49
    $region48: #{_lambda_.1} parent=1 // pred_region
      %606 = dma.done [#allocation4], 32
    $region49: #{_lambda_.1} parent=1 // pred_fallthru
      _
    %607 = vsyncpa [#allocation3], 1
    %608 = vsyncpa [#allocation6], 1
    %609 = vsyncpa [#allocation4], 1

</llo_original>
